<compile_context>
chip_gen: v5e
topology: v5e:2x2
jax: 0.10.0
libtpu: 0.0.40
codegen_flags: <defaults>
</compile_context>

<pallas_src>
import functools

import jax
import jax.numpy as jnp
from jax import lax
from jax.experimental import pallas as pl
from jax.experimental.pallas import tpu as pltpu

BN_EPS = 1e-5            # PyTorch BatchNorm1d default
_LANE = 128
_SUBLANE = 8
_TARGET_TILE_BYTES = 4 * 1024 * 1024   # ~4 MiB embedding block per grid step
_MIN_TILE_ROWS = 512
_MAX_TILE_ROWS = 8192
_VMEM_LIMIT_CAP = 48 * 1024 * 1024     # stay under v7x's 64 MiB physical VMEM


def _round_up(x, m):
    return (x + m - 1) // m * m


def vnagg_kernel(n_valid, ragged,
                 eps_ref, idx_ref, emb_ref, vn_ref,
                 w1_ref, b1_ref, g1_ref, be1_ref,
                 w2_ref, b2_ref, g2_ref, be2_ref,
                 out_ref, acc_ref):
    k = pl.program_id(0)
    B = acc_ref.shape[0]
    tn = emb_ref.shape[0]

    @pl.when(k == 0)
    def _init():
        acc_ref[...] = jnp.zeros_like(acc_ref)

    # ---- segment-sum tile: lane-dense (B, TN) one-hot @ (TN, dim) on the MXU ----
    emb = emb_ref[...]                                             # (TN, dim)
    if ragged:
        # Last tile overruns N: reads past the array are garbage — zero them with
        # a select (a 0*NaN on the MXU would poison the accumulator).
        row = lax.broadcasted_iota(jnp.int32, emb.shape, 0) + k * tn
        emb = jnp.where(row < n_valid, emb, jnp.zeros_like(emb))

    idx = idx_ref[...]                                             # (1, TN) int32
    iota_b = lax.broadcasted_iota(jnp.int32, (B, tn), 0)           # (B, TN)
    onehot = (idx == iota_b).astype(emb.dtype)                     # (B, TN)
    acc_ref[...] += jnp.dot(onehot, emb,
                            preferred_element_type=jnp.float32)    # (B, dim)

    # ---- epilogue: eps residual + Linear -> BN -> ReLU -> Linear -> BN -> ReLU ----
    @pl.when(k == pl.num_programs(0) - 1)
    def _epilogue():
        eps = eps_ref[0, 0]
        vn = (1.0 + eps) * vn_ref[...] + acc_ref[...]              # (B, dim)

        h = jnp.dot(vn, w1_ref[...], preferred_element_type=jnp.float32) + b1_ref[...]
        mu1 = jnp.mean(h, axis=0, keepdims=True)
        var1 = jnp.mean((h - mu1) ** 2, axis=0, keepdims=True)     # biased var (train mode)
        h = (h - mu1) * lax.rsqrt(var1 + BN_EPS) * g1_ref[...] + be1_ref[...]
        h = jnp.maximum(h, 0.0)

        h2 = jnp.dot(h, w2_ref[...], preferred_element_type=jnp.float32) + b2_ref[...]
        mu2 = jnp.mean(h2, axis=0, keepdims=True)
        var2 = jnp.mean((h2 - mu2) ** 2, axis=0, keepdims=True)
        h2 = (h2 - mu2) * lax.rsqrt(var2 + BN_EPS) * g2_ref[...] + be2_ref[...]
        out_ref[...] = jnp.maximum(h2, 0.0)


@functools.partial(jax.jit, static_argnames=("tile_n",))
def vnagg_forward(virtual_node, embeddings, batch_idx, params, eps=0.0, *, tile_n=None):
    B, dim = virtual_node.shape
    N = embeddings.shape[0]
    hdim = params["w1"].shape[1]
    emb_dtype = embeddings.dtype            # stream as given; cast to bf16 at the producer
    itemsize = jnp.dtype(emb_dtype).itemsize

    # ---- byte-targeted N tile (multiple of 128 lanes for the idx BlockSpec) ----
    if tile_n is not None:
        tn_cap = _round_up(max(int(tile_n), _LANE), _LANE)
    else:
        rows = _TARGET_TILE_BYTES // max(dim * itemsize, 1)
        tn_cap = _round_up(min(max(rows, _MIN_TILE_ROWS), _MAX_TILE_ROWS), _LANE)

    if N == 0:
        # Empty graph batch: one dummy all-zero / all-masked tile.
        tn, num_tiles, ragged, n_valid = _SUBLANE, 1, False, 0
        emb_in = jnp.zeros((_SUBLANE, dim), emb_dtype)
        idx_in = jnp.full((1, _SUBLANE), B, jnp.int32)
    elif N <= tn_cap:
        # Single full-array tile: zero padding, zero copies.
        tn, num_tiles, ragged, n_valid = N, 1, False, N
        emb_in = embeddings
        idx_in = batch_idx.astype(jnp.int32).reshape(1, N)
    else:
        tn = tn_cap
        num_tiles = (N + tn - 1) // tn
        n_pad = num_tiles * tn
        ragged, n_valid = (n_pad != N), N
        emb_in = embeddings                  # no padded copy; OOB rows masked in-kernel
        if ragged:
            idx_in = jnp.full((1, n_pad), B, jnp.int32).at[0, :N].set(
                batch_idx.astype(jnp.int32))
        else:
            idx_in = batch_idx.astype(jnp.int32).reshape(1, N)

    vn_in = virtual_node.astype(jnp.float32)
    eps_arr = jnp.asarray(eps, dtype=jnp.float32).reshape(1, 1)

    def row(a):
        return jnp.asarray(a, jnp.float32).reshape(1, -1)

    w1 = jnp.asarray(params["w1"], jnp.float32)
    w2 = jnp.asarray(params["w2"], jnp.float32)
    b1, g1, be1 = row(params["b1"]), row(params["g1"]), row(params["be1"])
    b2, g2, be2 = row(params["b2"]), row(params["g2"]), row(params["be2"])

    def resident(shape):
        return pl.BlockSpec(shape, lambda k: (0, 0))               # fetched once, VMEM resident

    in_specs = [
        pl.BlockSpec(memory_space=pltpu.MemorySpace.SMEM),         # eps scalar
        pl.BlockSpec((1, tn), lambda k: (0, k)),                   # batch_idx tile (lanes)
        pl.BlockSpec((tn, dim), lambda k: (k, 0)),                 # embeddings tile
        resident((B, dim)),                                        # virtual node
        resident((dim, hdim)), resident((1, hdim)),
        resident((1, hdim)), resident((1, hdim)),
        resident((hdim, dim)), resident((1, dim)),
        resident((1, dim)), resident((1, dim)),
    ]

    # Raise the scoped-VMEM limit only when the footprint needs it (v5e default 16 MiB).
    resident_bytes = 4 * (dim * hdim + hdim * dim + 3 * (hdim + dim) + B * dim)
    est_vmem = (2 * tn * dim * itemsize + 2 * tn * 4      # double-buffered emb + idx tiles
                + 2 * resident_bytes                      # residents (double-buffered)
                + 3 * 4 * B * dim)                        # acc scratch + out + slack
    vmem_limit = None
    if est_vmem > 12 * 1024 * 1024:
        vmem_limit = min(_round_up(2 * est_vmem, 1 << 20), _VMEM_LIMIT_CAP)

    n_eff = max(N, 1)
    cost = pl.CostEstimate(
        flops=2 * n_eff * B * dim + 4 * B * dim * hdim,
        transcendentals=hdim + dim,
        bytes_accessed=(n_eff * dim * itemsize + 4 * n_eff + resident_bytes + 4 * B * dim),
    )

    out = pl.pallas_call(
        functools.partial(vnagg_kernel, n_valid, bool(ragged)),
        out_shape=jax.ShapeDtypeStruct((B, dim), jnp.float32),
        grid=(num_tiles,),
        in_specs=in_specs,
        out_specs=pl.BlockSpec((B, dim), lambda k: (0, 0)),
        scratch_shapes=[pltpu.VMEM((B, dim), jnp.float32)],
        input_output_aliases={3: 0},                               # reuse the vn buffer
        compiler_params=pltpu.CompilerParams(
            dimension_semantics=("arbitrary",),
            vmem_limit_bytes=vmem_limit),
        cost_estimate=cost,
    )(eps_arr, idx_in, emb_in, vn_in, w1, b1, g1, be1, w2, b2, g2, be2)
    return out


def vnagg_reference(virtual_node, embeddings, batch_idx, params, eps=0.0):
    """Pure-JAX reference matching PyTorch training-mode forward."""
    B, dim = virtual_node.shape
    sum_emb = jnp.zeros((B, dim), jnp.float32).at[batch_idx].add(
        embeddings.astype(jnp.float32))
    x = (1.0 + eps) * virtual_node.astype(jnp.float32) + sum_emb

    def bn(v, g, b):
        mu = jnp.mean(v, axis=0, keepdims=True)
        var = jnp.mean((v - mu) ** 2, axis=0, keepdims=True)
        return (v - mu) * lax.rsqrt(var + BN_EPS) * g + b

    h = x @ params["w1"] + params["b1"]
    h = jnp.maximum(bn(h, params["g1"], params["be1"]), 0.0)
    h = h @ params["w2"] + params["b2"]
    h = jnp.maximum(bn(h, params["g2"], params["be2"]), 0.0)
    return h


if __name__ == "__main__":
    def make(key, B, N, dim):
        hdim = 2 * dim
        ks = jax.random.split(key, 7)
        vn = jax.random.normal(ks[0], (B, dim), jnp.float32)
        emb = jax.random.normal(ks[1], (N, dim), jnp.float32)
        idx = jax.random.randint(ks[2], (N,), 0, B, jnp.int32)
        params = {
            # Linear weights stored as [in, out] so the kernel does x @ W + b.
            "w1": jax.random.normal(ks[3], (dim, hdim), jnp.float32) / jnp.sqrt(dim),
            "b1": jax.random.normal(ks[4], (hdim,), jnp.float32) * 0.01,
            "g1": jnp.ones((hdim,), jnp.float32),    # BatchNorm1d(2*dim) gamma
            "be1": jnp.zeros((hdim,), jnp.float32),  # BatchNorm1d(2*dim) beta
            "w2": jax.random.normal(ks[5], (hdim, dim), jnp.float32) / jnp.sqrt(hdim),
            "b2": jax.random.normal(ks[6], (dim,), jnp.float32) * 0.01,
            "g2": jnp.ones((dim,), jnp.float32),     # outer BatchNorm1d(dim) gamma
            "be2": jnp.zeros((dim,), jnp.float32),   # outer BatchNorm1d(dim) beta
        }
        return vn, emb, idx, params

    # 1) lane-dense dim=128, multi-tile ragged grid (tile_n=128 -> 3 tiles, last partial)
    vn, emb, idx, params = make(jax.random.PRNGKey(0), 4, 300, 128)
    out = jax.block_until_ready(vnagg_forward(vn, emb, idx, params, 0.0, tile_n=128))
    ref = vnagg_reference(vn, emb, idx, params, 0.0)
    assert out.shape == ref.shape
    assert jnp.allclose(out, ref, atol=1e-3, rtol=1e-3), "f32 multi-tile mismatch"

    # 2) non-multiple-of-128 feature dim (hidden_dim=100 default), single full-array tile
    vn2, emb2, idx2, params2 = make(jax.random.PRNGKey(1), 3, 57, 100)
    out2 = jax.block_until_ready(vnagg_forward(vn2, emb2, idx2, params2, 0.1))
    ref2 = vnagg_reference(vn2, emb2, idx2, params2, 0.1)
    assert jnp.allclose(out2, ref2, atol=1e-3, rtol=1e-3), "f32 dim=100 mismatch"

    # 3) bf16-streamed embeddings (recommended: cast at the producer, not the wrapper)
    out3 = jax.block_until_ready(
        vnagg_forward(vn, emb.astype(jnp.bfloat16), idx, params, 0.0, tile_n=128))
    ref3 = vnagg_reference(vn, emb.astype(jnp.bfloat16).astype(jnp.float32),
                           idx, params, 0.0)
    assert jnp.allclose(out3, ref3, atol=5e-3, rtol=5e-3), "bf16 mismatch vs reference"

    print("KERNEL_OK")
</pallas_src>

<mosaic_0001>
module attributes {stable_mosaic.version = 11 : i64} {
  func.func @vnagg_kernel(%arg0: i32, %arg1: memref<1x1xf32, #tpu.memory_space<smem>>, %arg2: memref<1x128xi32, #tpu.memory_space<vmem>>, %arg3: memref<128x128xf32, #tpu.memory_space<vmem>>, %arg4: memref<4x128xf32, #tpu.memory_space<vmem>>, %arg5: memref<128x256xf32, #tpu.memory_space<vmem>>, %arg6: memref<1x256xf32, #tpu.memory_space<vmem>>, %arg7: memref<1x256xf32, #tpu.memory_space<vmem>>, %arg8: memref<1x256xf32, #tpu.memory_space<vmem>>, %arg9: memref<256x128xf32, #tpu.memory_space<vmem>>, %arg10: memref<1x128xf32, #tpu.memory_space<vmem>>, %arg11: memref<1x128xf32, #tpu.memory_space<vmem>>, %arg12: memref<1x128xf32, #tpu.memory_space<vmem>>, %arg13: memref<4x128xf32, #tpu.memory_space<vmem>>, %arg14: memref<4x128xf32, #tpu.memory_space<vmem>>) attributes {dimension_semantics = [#tpu.dimension_semantics<arbitrary>], iteration_bounds = array<i64: 3>, scalar_prefetch = 0 : i64, scratch_operands = 1 : i64, tpu.core_type = #tpu.core_type<tc>, window_params = [{transform_indices = @transform_0, window_bounds = array<i64: 1, 1>}, {transform_indices = @transform_1, window_bounds = array<i64: 1, 128>}, {transform_indices = @transform_2, window_bounds = array<i64: 128, 128>}, {pipeline_mode = #tpu.pipeline_mode<synchronous>, transform_indices = @transform_3, window_bounds = array<i64: 4, 128>}, {pipeline_mode = #tpu.pipeline_mode<synchronous>, transform_indices = @transform_4, window_bounds = array<i64: 128, 256>}, {pipeline_mode = #tpu.pipeline_mode<synchronous>, transform_indices = @transform_5, window_bounds = array<i64: 1, 256>}, {pipeline_mode = #tpu.pipeline_mode<synchronous>, transform_indices = @transform_6, window_bounds = array<i64: 1, 256>}, {pipeline_mode = #tpu.pipeline_mode<synchronous>, transform_indices = @transform_7, window_bounds = array<i64: 1, 256>}, {pipeline_mode = #tpu.pipeline_mode<synchronous>, transform_indices = @transform_8, window_bounds = array<i64: 256, 128>}, {pipeline_mode = #tpu.pipeline_mode<synchronous>, transform_indices = @transform_9, window_bounds = array<i64: 1, 128>}, {pipeline_mode = #tpu.pipeline_mode<synchronous>, transform_indices = @transform_10, window_bounds = array<i64: 1, 128>}, {pipeline_mode = #tpu.pipeline_mode<synchronous>, transform_indices = @transform_11, window_bounds = array<i64: 1, 128>}, {pipeline_mode = #tpu.pipeline_mode<synchronous>, transform_indices = @transform_12, window_bounds = array<i64: 4, 128>}]} {
    %c0_i32 = arith.constant 0 : i32
    %0 = arith.cmpi eq, %arg0, %c0_i32 : i32
    %1 = arith.extui %0 : i1 to i32
    %c0_i32_0 = arith.constant 0 : i32
    %2 = arith.cmpi ne, %1, %c0_i32_0 : i32
    scf.if %2 {
      %cst_10 = arith.constant 0.000000e+00 : f32
      %25 = vector.broadcast %cst_10 : f32 to vector<4x128xf32>
      %c0_11 = arith.constant 0 : index
      %c0_12 = arith.constant 0 : index
      %26 = vector.load %arg14[%c0_11, %c0_12] : memref<4x128xf32, #tpu.memory_space<vmem>>, vector<4x128xf32>
      tpu.vector_store %arg14[%c0_11, %c0_12], %25 {strides = array<i32>} : memref<4x128xf32, #tpu.memory_space<vmem>>, vector<4x128xf32>,
    } else {
    }
    %c0 = arith.constant 0 : index
    %c0_1 = arith.constant 0 : index
    %3 = vector.load %arg3[%c0, %c0_1] : memref<128x128xf32, #tpu.memory_space<vmem>>, vector<128x128xf32>
    %4 = tpu.iota {dimensions = array<i32: 0>} : vector<128x128xi32>
    %c128_i32 = arith.constant 128 : i32
    %5 = arith.muli %arg0, %c128_i32 : i32
    %6 = vector.broadcast %5 : i32 to vector<128x128xi32>
    %7 = arith.addi %4, %6 : vector<128x128xi32>
    %c300_i32 = arith.constant 300 : i32
    %8 = vector.broadcast %c300_i32 : i32 to vector<128x128xi32>
    %9 = arith.cmpi slt, %7, %8 : vector<128x128xi32>
    %cst = arith.constant 0.000000e+00 : f32
    %10 = vector.broadcast %cst : f32 to vector<128x128xf32>
    %11 = arith.select %9, %3, %10 : vector<128x128xi1>, vector<128x128xf32>
    %c0_2 = arith.constant 0 : index
    %c0_3 = arith.constant 0 : index
    %12 = vector.load %arg2[%c0_2, %c0_3] : memref<1x128xi32, #tpu.memory_space<vmem>>, vector<1x128xi32>
    %13 = tpu.iota {dimensions = array<i32: 0>} : vector<4x128xi32>
    %14 = vector.broadcast %12 : vector<1x128xi32> to vector<4x128xi32>
    %15 = arith.cmpi eq, %14, %13 : vector<4x128xi32>
    %16 = arith.extui %15 : vector<4x128xi1> to vector<4x128xi32>
    %17 = arith.sitofp %16 : vector<4x128xi32> to vector<4x128xf32>
    %c0_4 = arith.constant 0 : index
    %c0_5 = arith.constant 0 : index
    %18 = vector.load %arg14[%c0_4, %c0_5] : memref<4x128xf32, #tpu.memory_space<vmem>>, vector<4x128xf32>
    %cst_6 = arith.constant dense<0.000000e+00> : vector<4x128xf32>
    %19 = tpu.matmul %17, %11, %cst_6 {dimension_numbers = #tpu.dot_dimension_numbers<[1], [0], [0], [1], [0, 0, 1, 1], [], []>} : vector<4x128xf32>, vector<128x128xf32>, vector<4x128xf32> -> vector<4x128xf32>
    %20 = arith.addf %18, %19 : vector<4x128xf32>
    %c0_7 = arith.constant 0 : index
    %c0_8 = arith.constant 0 : index
    %21 = vector.load %arg14[%c0_7, %c0_8] : memref<4x128xf32, #tpu.memory_space<vmem>>, vector<4x128xf32>
    tpu.vector_store %arg14[%c0_7, %c0_8], %20 {strides = array<i32>} : memref<4x128xf32, #tpu.memory_space<vmem>>, vector<4x128xf32>,
    %c2_i32 = arith.constant 2 : i32
    %22 = arith.cmpi eq, %arg0, %c2_i32 : i32
    %23 = arith.extui %22 : i1 to i32
    %c0_i32_9 = arith.constant 0 : i32
    %24 = arith.cmpi ne, %23, %c0_i32_9 : i32
    scf.if %24 {
      %c0_10 = arith.constant 0 : index
      %c0_11 = arith.constant 0 : index
      %25 = memref.load %arg1[%c0_10, %c0_11] : memref<1x1xf32, #tpu.memory_space<smem>>
      %cst_12 = arith.constant 1.000000e+00 : f32
      %26 = arith.addf %cst_12, %25 : f32
      %c0_13 = arith.constant 0 : index
      %c0_14 = arith.constant 0 : index
      %27 = vector.load %arg4[%c0_13, %c0_14] : memref<4x128xf32, #tpu.memory_space<vmem>>, vector<4x128xf32>
      %28 = vector.broadcast %26 : f32 to vector<4x128xf32>
      %29 = arith.mulf %28, %27 : vector<4x128xf32>
      %c0_15 = arith.constant 0 : index
      %c0_16 = arith.constant 0 : index
      %30 = vector.load %arg14[%c0_15, %c0_16] : memref<4x128xf32, #tpu.memory_space<vmem>>, vector<4x128xf32>
      %31 = arith.addf %29, %30 : vector<4x128xf32>
      %c0_17 = arith.constant 0 : index
      %c0_18 = arith.constant 0 : index
      %32 = vector.load %arg5[%c0_17, %c0_18] : memref<128x256xf32, #tpu.memory_space<vmem>>, vector<128x256xf32>
      %cst_19 = arith.constant dense<0.000000e+00> : vector<4x256xf32>
      %33 = tpu.matmul %31, %32, %cst_19 {dimension_numbers = #tpu.dot_dimension_numbers<[1], [0], [0], [1], [0, 0, 1, 1], [], []>} : vector<4x128xf32>, vector<128x256xf32>, vector<4x256xf32> -> vector<4x256xf32>
      %c0_20 = arith.constant 0 : index
      %c0_21 = arith.constant 0 : index
      %34 = vector.load %arg6[%c0_20, %c0_21] : memref<1x256xf32, #tpu.memory_space<vmem>>, vector<1x256xf32>
      %35 = vector.broadcast %34 : vector<1x256xf32> to vector<4x256xf32>
      %36 = arith.addf %33, %35 : vector<4x256xf32>
      %cst_22 = arith.constant dense<0.000000e+00> : vector<256xf32>
      %37 = vector.multi_reduction <add>, %36, %cst_22 [0] : vector<4x256xf32> to vector<256xf32>
      %38 = vector.shape_cast %37 : vector<256xf32> to vector<1x256xf32>
      %cst_23 = arith.constant 4.000000e+00 : f32
      %39 = vector.broadcast %cst_23 : f32 to vector<1x256xf32>
      %40 = arith.divf %38, %39 : vector<1x256xf32>
      %41 = vector.broadcast %40 : vector<1x256xf32> to vector<4x256xf32>
      %42 = arith.subf %36, %41 : vector<4x256xf32>
      %43 = arith.mulf %42, %42 : vector<4x256xf32>
      %cst_24 = arith.constant dense<0.000000e+00> : vector<256xf32>
      %44 = vector.multi_reduction <add>, %43, %cst_24 [0] : vector<4x256xf32> to vector<256xf32>
      %45 = vector.shape_cast %44 : vector<256xf32> to vector<1x256xf32>
      %cst_25 = arith.constant 4.000000e+00 : f32
      %46 = vector.broadcast %cst_25 : f32 to vector<1x256xf32>
      %47 = arith.divf %45, %46 : vector<1x256xf32>
      %48 = vector.broadcast %40 : vector<1x256xf32> to vector<4x256xf32>
      %49 = arith.subf %36, %48 : vector<4x256xf32>
      %cst_26 = arith.constant 9.99999974E-6 : f32
      %50 = vector.broadcast %cst_26 : f32 to vector<1x256xf32>
      %51 = arith.addf %47, %50 : vector<1x256xf32>
      %52 = math.rsqrt %51 : vector<1x256xf32>
      %53 = vector.broadcast %52 : vector<1x256xf32> to vector<4x256xf32>
      %54 = arith.mulf %49, %53 : vector<4x256xf32>
      %c0_27 = arith.constant 0 : index
      %c0_28 = arith.constant 0 : index
      %55 = vector.load %arg7[%c0_27, %c0_28] : memref<1x256xf32, #tpu.memory_space<vmem>>, vector<1x256xf32>
      %56 = vector.broadcast %55 : vector<1x256xf32> to vector<4x256xf32>
      %57 = arith.mulf %54, %56 : vector<4x256xf32>
      %c0_29 = arith.constant 0 : index
      %c0_30 = arith.constant 0 : index
      %58 = vector.load %arg8[%c0_29, %c0_30] : memref<1x256xf32, #tpu.memory_space<vmem>>, vector<1x256xf32>
      %59 = vector.broadcast %58 : vector<1x256xf32> to vector<4x256xf32>
      %60 = arith.addf %57, %59 : vector<4x256xf32>
      %cst_31 = arith.constant 0.000000e+00 : f32
      %61 = vector.broadcast %cst_31 : f32 to vector<4x256xf32>
      %62 = arith.maximumf %60, %61 : vector<4x256xf32>
      %c0_32 = arith.constant 0 : index
      %c0_33 = arith.constant 0 : index
      %63 = vector.load %arg9[%c0_32, %c0_33] : memref<256x128xf32, #tpu.memory_space<vmem>>, vector<256x128xf32>
      %cst_34 = arith.constant dense<0.000000e+00> : vector<4x128xf32>
      %64 = tpu.matmul %62, %63, %cst_34 {dimension_numbers = #tpu.dot_dimension_numbers<[1], [0], [0], [1], [0, 0, 1, 1], [], []>} : vector<4x256xf32>, vector<256x128xf32>, vector<4x128xf32> -> vector<4x128xf32>
      %c0_35 = arith.constant 0 : index
      %c0_36 = arith.constant 0 : index
      %65 = vector.load %arg10[%c0_35, %c0_36] : memref<1x128xf32, #tpu.memory_space<vmem>>, vector<1x128xf32>
      %66 = vector.broadcast %65 : vector<1x128xf32> to vector<4x128xf32>
      %67 = arith.addf %64, %66 : vector<4x128xf32>
      %cst_37 = arith.constant dense<0.000000e+00> : vector<128xf32>
      %68 = vector.multi_reduction <add>, %67, %cst_37 [0] : vector<4x128xf32> to vector<128xf32>
      %69 = vector.shape_cast %68 : vector<128xf32> to vector<1x128xf32>
      %cst_38 = arith.constant 4.000000e+00 : f32
      %70 = vector.broadcast %cst_38 : f32 to vector<1x128xf32>
      %71 = arith.divf %69, %70 : vector<1x128xf32>
      %72 = vector.broadcast %71 : vector<1x128xf32> to vector<4x128xf32>
      %73 = arith.subf %67, %72 : vector<4x128xf32>
      %74 = arith.mulf %73, %73 : vector<4x128xf32>
      %cst_39 = arith.constant dense<0.000000e+00> : vector<128xf32>
      %75 = vector.multi_reduction <add>, %74, %cst_39 [0] : vector<4x128xf32> to vector<128xf32>
      %76 = vector.shape_cast %75 : vector<128xf32> to vector<1x128xf32>
      %cst_40 = arith.constant 4.000000e+00 : f32
      %77 = vector.broadcast %cst_40 : f32 to vector<1x128xf32>
      %78 = arith.divf %76, %77 : vector<1x128xf32>
      %79 = vector.broadcast %71 : vector<1x128xf32> to vector<4x128xf32>
      %80 = arith.subf %67, %79 : vector<4x128xf32>
      %cst_41 = arith.constant 9.99999974E-6 : f32
      %81 = vector.broadcast %cst_41 : f32 to vector<1x128xf32>
      %82 = arith.addf %78, %81 : vector<1x128xf32>
      %83 = math.rsqrt %82 : vector<1x128xf32>
      %84 = vector.broadcast %83 : vector<1x128xf32> to vector<4x128xf32>
      %85 = arith.mulf %80, %84 : vector<4x128xf32>
      %c0_42 = arith.constant 0 : index
      %c0_43 = arith.constant 0 : index
      %86 = vector.load %arg11[%c0_42, %c0_43] : memref<1x128xf32, #tpu.memory_space<vmem>>, vector<1x128xf32>
      %87 = vector.broadcast %86 : vector<1x128xf32> to vector<4x128xf32>
      %88 = arith.mulf %85, %87 : vector<4x128xf32>
      %c0_44 = arith.constant 0 : index
      %c0_45 = arith.constant 0 : index
      %89 = vector.load %arg12[%c0_44, %c0_45] : memref<1x128xf32, #tpu.memory_space<vmem>>, vector<1x128xf32>
      %90 = vector.broadcast %89 : vector<1x128xf32> to vector<4x128xf32>
      %91 = arith.addf %88, %90 : vector<4x128xf32>
      %cst_46 = arith.constant 0.000000e+00 : f32
      %92 = vector.broadcast %cst_46 : f32 to vector<4x128xf32>
      %93 = arith.maximumf %91, %92 : vector<4x128xf32>
      %c0_47 = arith.constant 0 : index
      %c0_48 = arith.constant 0 : index
      %94 = vector.load %arg13[%c0_47, %c0_48] : memref<4x128xf32, #tpu.memory_space<vmem>>, vector<4x128xf32>
      tpu.vector_store %arg13[%c0_47, %c0_48], %93 {strides = array<i32>} : memref<4x128xf32, #tpu.memory_space<vmem>>, vector<4x128xf32>,
    } else {
    }
    return
  }
  func.func @transform_0(%arg0: i32) -> (i32, i32) {
    %c0_i32 = arith.constant 0 : i32
    %c0_i32_0 = arith.constant 0 : i32
    %c0_i32_1 = arith.constant 0 : i32
    return %c0_i32, %c0_i32_0 : i32, i32
  }
  func.func @transform_1(%arg0: i32) -> (i32, i32) {
    %c0_i32 = arith.constant 0 : i32
    %c0_i32_0 = arith.constant 0 : i32
    return %c0_i32, %arg0 : i32, i32
  }
  func.func @transform_2(%arg0: i32) -> (i32, i32) {
    %c0_i32 = arith.constant 0 : i32
    %c0_i32_0 = arith.constant 0 : i32
    return %arg0, %c0_i32 : i32, i32
  }
  func.func @transform_3(%arg0: i32) -> (i32, i32) {
    %c0_i32 = arith.constant 0 : i32
    %c0_i32_0 = arith.constant 0 : i32
    %c0_i32_1 = arith.constant 0 : i32
    return %c0_i32, %c0_i32_0 : i32, i32
  }
  func.func @transform_4(%arg0: i32) -> (i32, i32) {
    %c0_i32 = arith.constant 0 : i32
    %c0_i32_0 = arith.constant 0 : i32
    %c0_i32_1 = arith.constant 0 : i32
    return %c0_i32, %c0_i32_0 : i32, i32
  }
  func.func @transform_5(%arg0: i32) -> (i32, i32) {
    %c0_i32 = arith.constant 0 : i32
    %c0_i32_0 = arith.constant 0 : i32
    %c0_i32_1 = arith.constant 0 : i32
    return %c0_i32, %c0_i32_0 : i32, i32
  }
  func.func @transform_6(%arg0: i32) -> (i32, i32) {
    %c0_i32 = arith.constant 0 : i32
    %c0_i32_0 = arith.constant 0 : i32
    %c0_i32_1 = arith.constant 0 : i32
    return %c0_i32, %c0_i32_0 : i32, i32
  }
  func.func @transform_7(%arg0: i32) -> (i32, i32) {
    %c0_i32 = arith.constant 0 : i32
    %c0_i32_0 = arith.constant 0 : i32
    %c0_i32_1 = arith.constant 0 : i32
    return %c0_i32, %c0_i32_0 : i32, i32
  }
  func.func @transform_8(%arg0: i32) -> (i32, i32) {
    %c0_i32 = arith.constant 0 : i32
    %c0_i32_0 = arith.constant 0 : i32
    %c0_i32_1 = arith.constant 0 : i32
    return %c0_i32, %c0_i32_0 : i32, i32
  }
  func.func @transform_9(%arg0: i32) -> (i32, i32) {
    %c0_i32 = arith.constant 0 : i32
    %c0_i32_0 = arith.constant 0 : i32
    %c0_i32_1 = arith.constant 0 : i32
    return %c0_i32, %c0_i32_0 : i32, i32
  }
  func.func @transform_10(%arg0: i32) -> (i32, i32) {
    %c0_i32 = arith.constant 0 : i32
    %c0_i32_0 = arith.constant 0 : i32
    %c0_i32_1 = arith.constant 0 : i32
    return %c0_i32, %c0_i32_0 : i32, i32
  }
  func.func @transform_11(%arg0: i32) -> (i32, i32) {
    %c0_i32 = arith.constant 0 : i32
    %c0_i32_0 = arith.constant 0 : i32
    %c0_i32_1 = arith.constant 0 : i32
    return %c0_i32, %c0_i32_0 : i32, i32
  }
  func.func @transform_12(%arg0: i32) -> (i32, i32) {
    %c0_i32 = arith.constant 0 : i32
    %c0_i32_0 = arith.constant 0 : i32
    %c0_i32_1 = arith.constant 0 : i32
    return %c0_i32, %c0_i32_0 : i32, i32
  }
}

</mosaic_0001>

<llo_original>
// kernel: vnagg_forward.1
$region0: #{vnagg_forward.1}
  #allocation0 [shape = 'u32[]', space=smem, size = 0x4, offset = 0x4, fixed_abs, tag = 'smem constant byte address 0x4 - core index']
  #allocation1 [shape = 'u32[72,128]{1,0:T(1,128)}', space=vmem, size = 0x9000, scoped, tag = 'internal scratch']
  #allocation2 [shape = 'f32[4,128]{1,0:T(4,128)}', space=vmem, size = 0x800, scoped, tag = 'scratch operand']
  #allocation3 [shape = 'f32[1,1]{1,0:T(1,128)S(6)}', space=smem, size = 0x200, scoped, tag = 'scoped memory for vnagg_forward.1']
  %s0 = inlined_call_operand.<no memory space> [shape: f32[1,1], index: 0, kind: input, shape index: {}]
  %s1 = inlined_call_operand.vmem [shape: s32[1,384], index: 1, kind: input, shape index: {}]
  %s2 = inlined_call_operand.hbm [shape: f32[300,128], index: 2, kind: input, shape index: {}]
  %s3 = inlined_call_operand.hbm [shape: f32[4,128], index: 3, kind: input, shape index: {}, may-alias: {3,12}]
  %s4 = inlined_call_operand.hbm [shape: f32[128,256], index: 4, kind: input, shape index: {}]
  %s5 = inlined_call_operand.vmem [shape: f32[1,256], index: 5, kind: input, shape index: {}]
  %s6 = inlined_call_operand.vmem [shape: f32[1,256], index: 6, kind: input, shape index: {}]
  %s7 = inlined_call_operand.vmem [shape: f32[1,256], index: 7, kind: input, shape index: {}]
  %s8 = inlined_call_operand.hbm [shape: f32[256,128], index: 8, kind: input, shape index: {}]
  %s9 = inlined_call_operand.vmem [shape: f32[1,128], index: 9, kind: input, shape index: {}]
  %s10 = inlined_call_operand.vmem [shape: f32[1,128], index: 10, kind: input, shape index: {}]
  %s11 = inlined_call_operand.vmem [shape: f32[1,128], index: 11, kind: input, shape index: {}]
  %s12 = inlined_call_operand.hbm [shape: f32[4,128], index: 12, kind: output, shape index: {}, may-alias: {3,12}]
  %s13 = sld [smem:[#allocation0]]
  $region105: #{vnagg_forward.1} parent=0
    _
  %s15 = ssub.s32 1, %s13
  %s16 = scalar_select 0, %s15, %s13
  %17 = sst [smem:[#allocation3]] %s0
  $region1: #{vnagg_forward.1} parent=0
    #allocation4 [shape = 'u8[131072]{0}', space=vmem, size = 0x20000, scoped, tag = 'input window, operand 2']
    #allocation5 [shape = 's32[2]{0}', space=sflag, size = 0x8, scoped, tag = 'scoped memory for vnagg_forward.1']
    #allocation6 [shape = 's32[2]{0}', space=sflag, size = 0x8, scoped, tag = 'scoped memory for vnagg_forward.1']
    #allocation7 [shape = 'u8[2048]{0}', space=vmem, size = 0x800, scoped, tag = 'input window, operand 3, single buffered']
    #allocation8 [shape = 's32[1]{0}', space=sflag, size = 0x4, scoped, tag = 'scoped memory for vnagg_forward.1']
    #allocation9 [shape = 'u8[131072]{0}', space=vmem, size = 0x20000, scoped, tag = 'input window, operand 4, single buffered']
    #allocation10 [shape = 'u8[131072]{0}', space=vmem, size = 0x20000, scoped, tag = 'input window, operand 8, single buffered']
    #allocation11 [shape = 's32[1]{0}', space=sflag, size = 0x4, scoped, tag = 'scoped memory for vnagg_forward.1']
    #allocation12 [shape = 'u8[2048]{0}', space=vmem, size = 0x800, scoped, tag = 'output window, operand 0, single buffered']
    %18 = vsyncpa [#allocation5], 0
    %s19 = scalar_lea.sflag [#allocation5], 1
    %20 = vsyncpa %s19, 0
    %21 = vsyncpa [#allocation8], 0
    %22 = vsyncpa [#allocation11], 0
    %23 = vsyncpa [#allocation6], 0
    loop: start=0, step=1, limit=5
    $region2: #{vnagg_forward.1} parent=1 // loop_pre_header
      _
    $region3: #{vnagg_forward.1} parent=1 // loop_header
      %s25 = sphi 0, %s29
      %p26 = scmp.ge.s32.totalorder %s25, 5
      %s33 = sphi 0, %s33
      %s35 = sphi 0, %s33
      %s36 = sphi 0, %s35
      %s50 = sphi 0, %s36
      %s56 = sphi 0, %s58
      %s59 = sphi 0, %s56
      %s60 = sphi 0, %s59
      %s76 = sphi 0, %s60
      %s82 = sphi 0, %s84
      %s85 = sphi 0, %s82
      %s86 = sphi 0, %s85
      %s102 = sphi 0, %s86
      %s106 = sphi 0, %s106
      %s108 = sphi 0, %s106
      %s109 = sphi 0, %s108
      %s123 = sphi 0, %s109
      %s127 = sphi 0, %s127
      %s129 = sphi 0, %s127
      %s130 = sphi 0, %s129
      %s144 = sphi 0, %s130
      %s148 = sphi 0, %s148
      %s150 = sphi 0, %s148
      %s151 = sphi 0, %s150
      %s165 = sphi 0, %s151
      %s169 = sphi 0, %s169
      %s171 = sphi 0, %s169
      %s172 = sphi 0, %s171
      %s186 = sphi 0, %s172
      %s190 = sphi 0, %s190
      %s192 = sphi 0, %s190
      %s193 = sphi 0, %s192
      %s207 = sphi 0, %s193
      %s211 = sphi 0, %s211
      %s213 = sphi 0, %s211
      %s214 = sphi 0, %s213
      %s228 = sphi 0, %s214
      %s232 = sphi 0, %s232
      %s234 = sphi 0, %s232
      %s235 = sphi 0, %s234
      %s249 = sphi 0, %s235
      %s253 = sphi 0, %s253
      %s255 = sphi 0, %s253
      %s256 = sphi 0, %s255
      %s270 = sphi 0, %s256
      %s274 = sphi 0, %s274
      %s276 = sphi 0, %s274
      %s277 = sphi 0, %s276
      %s291 = sphi 0, %s277
      %s295 = sphi 0, %s295
      %s297 = sphi 0, %s295
      %s298 = sphi 0, %s297
      %s312 = sphi 0, %s298
    $region4: #{vnagg_forward.1} parent=1 // loop_header_branch
      %28 = sbr.rel (%p26) target = $region8
    $region5: #{vnagg_forward.1} parent=1 // loop_body
      %s30 = ssub.s32 %s25, 1
      %s31 = ssub.s32 %s25, 2
      %s32 = sadd.s32 %s25, 1
      %s34 = sadd.s32 %s33, 1
      %p37 = scmp.eq.s32.totalorder %s25, 2
      %p38 = scmp.ne.s32.totalorder %s33, %s35
      %p39 = scmp.eq.s32.totalorder %s25, 0
      %p40 = por %p38, %p39
      %p41 = scmp.ne.s32.totalorder %s33, %s35
      %p42 = scmp.eq.s32.totalorder %s30, 2
      %p43 = por %p41, %p42
      %p44 = scmp.ne.s32.totalorder %s35, %s36
      %p45 = scmp.eq.s32.totalorder %s30, 0
      %p46 = por %p44, %p45
      %p47 = scmp.ne.s32.totalorder %s35, %s36
      %p48 = scmp.eq.s32.totalorder %s31, 2
      %p49 = por %p47, %p48
      %p51 = scmp.ne.s32.totalorder %s36, %s50
      %p52 = scmp.eq.s32.totalorder %s31, 0
      %p53 = por %p51, %p52
      %s54 = ssub.s32 %s25, %s32
      %p55 = scmp.eq.s32.totalorder %s54, 0
      %s57 = sadd.s32 %s56, 1
      %s58 = scalar_select %p55, %s56, %s57
      %p61 = pneg %p55
      %p62 = scmp.eq.s32.totalorder %s25, 2
      %p63 = por %p61, %p62
      %p64 = scmp.ne.s32.totalorder %s56, %s59
      %p65 = scmp.eq.s32.totalorder %s25, 0
      %p66 = por %p64, %p65
      %p67 = scmp.ne.s32.totalorder %s56, %s59
      %p68 = scmp.eq.s32.totalorder %s30, 2
      %p69 = por %p67, %p68
      %p70 = scmp.ne.s32.totalorder %s59, %s60
      %p71 = scmp.eq.s32.totalorder %s30, 0
      %p72 = por %p70, %p71
      %p73 = scmp.ne.s32.totalorder %s59, %s60
      %p74 = scmp.eq.s32.totalorder %s31, 2
      %p75 = por %p73, %p74
      %p77 = scmp.ne.s32.totalorder %s60, %s76
      %p78 = scmp.eq.s32.totalorder %s31, 0
      %p79 = por %p77, %p78
      %s80 = ssub.s32 %s25, %s32
      %p81 = scmp.eq.s32.totalorder %s80, 0
      %s83 = sadd.s32 %s82, 1
      %s84 = scalar_select %p81, %s82, %s83
      %p87 = pneg %p81
      %p88 = scmp.eq.s32.totalorder %s25, 2
      %p89 = por %p87, %p88
      %p90 = scmp.ne.s32.totalorder %s82, %s85
      %p91 = scmp.eq.s32.totalorder %s25, 0
      %p92 = por %p90, %p91
      %p93 = scmp.ne.s32.totalorder %s82, %s85
      %p94 = scmp.eq.s32.totalorder %s30, 2
      %p95 = por %p93, %p94
      %p96 = scmp.ne.s32.totalorder %s85, %s86
      %p97 = scmp.eq.s32.totalorder %s30, 0
      %p98 = por %p96, %p97
      %p99 = scmp.ne.s32.totalorder %s85, %s86
      %p100 = scmp.eq.s32.totalorder %s31, 2
      %p101 = por %p99, %p100
      %p103 = scmp.ne.s32.totalorder %s86, %s102
      %p104 = scmp.eq.s32.totalorder %s31, 0
      %p105 = por %p103, %p104
      %s107 = sadd.s32 %s106, 1
      %p110 = scmp.eq.s32.totalorder %s25, 2
      %p111 = scmp.ne.s32.totalorder %s106, %s108
      %p112 = scmp.eq.s32.totalorder %s25, 0
      %p113 = por %p111, %p112
      %p114 = scmp.ne.s32.totalorder %s106, %s108
      %p115 = scmp.eq.s32.totalorder %s30, 2
      %p116 = por %p114, %p115
      %p117 = scmp.ne.s32.totalorder %s108, %s109
      %p118 = scmp.eq.s32.totalorder %s30, 0
      %p119 = por %p117, %p118
      %p120 = scmp.ne.s32.totalorder %s108, %s109
      %p121 = scmp.eq.s32.totalorder %s31, 2
      %p122 = por %p120, %p121
      %p124 = scmp.ne.s32.totalorder %s109, %s123
      %p125 = scmp.eq.s32.totalorder %s31, 0
      %p126 = por %p124, %p125
      %s128 = sadd.s32 %s127, 1
      %p131 = scmp.eq.s32.totalorder %s25, 2
      %p132 = scmp.ne.s32.totalorder %s127, %s129
      %p133 = scmp.eq.s32.totalorder %s25, 0
      %p134 = por %p132, %p133
      %p135 = scmp.ne.s32.totalorder %s127, %s129
      %p136 = scmp.eq.s32.totalorder %s30, 2
      %p137 = por %p135, %p136
      %p138 = scmp.ne.s32.totalorder %s129, %s130
      %p139 = scmp.eq.s32.totalorder %s30, 0
      %p140 = por %p138, %p139
      %p141 = scmp.ne.s32.totalorder %s129, %s130
      %p142 = scmp.eq.s32.totalorder %s31, 2
      %p143 = por %p141, %p142
      %p145 = scmp.ne.s32.totalorder %s130, %s144
      %p146 = scmp.eq.s32.totalorder %s31, 0
      %p147 = por %p145, %p146
      %s149 = sadd.s32 %s148, 1
      %p152 = scmp.eq.s32.totalorder %s25, 2
      %p153 = scmp.ne.s32.totalorder %s148, %s150
      %p154 = scmp.eq.s32.totalorder %s25, 0
      %p155 = por %p153, %p154
      %p156 = scmp.ne.s32.totalorder %s148, %s150
      %p157 = scmp.eq.s32.totalorder %s30, 2
      %p158 = por %p156, %p157
      %p159 = scmp.ne.s32.totalorder %s150, %s151
      %p160 = scmp.eq.s32.totalorder %s30, 0
      %p161 = por %p159, %p160
      %p162 = scmp.ne.s32.totalorder %s150, %s151
      %p163 = scmp.eq.s32.totalorder %s31, 2
      %p164 = por %p162, %p163
      %p166 = scmp.ne.s32.totalorder %s151, %s165
      %p167 = scmp.eq.s32.totalorder %s31, 0
      %p168 = por %p166, %p167
      %s170 = sadd.s32 %s169, 1
      %p173 = scmp.eq.s32.totalorder %s25, 2
      %p174 = scmp.ne.s32.totalorder %s169, %s171
      %p175 = scmp.eq.s32.totalorder %s25, 0
      %p176 = por %p174, %p175
      %p177 = scmp.ne.s32.totalorder %s169, %s171
      %p178 = scmp.eq.s32.totalorder %s30, 2
      %p179 = por %p177, %p178
      %p180 = scmp.ne.s32.totalorder %s171, %s172
      %p181 = scmp.eq.s32.totalorder %s30, 0
      %p182 = por %p180, %p181
      %p183 = scmp.ne.s32.totalorder %s171, %s172
      %p184 = scmp.eq.s32.totalorder %s31, 2
      %p185 = por %p183, %p184
      %p187 = scmp.ne.s32.totalorder %s172, %s186
      %p188 = scmp.eq.s32.totalorder %s31, 0
      %p189 = por %p187, %p188
      %s191 = sadd.s32 %s190, 1
      %p194 = scmp.eq.s32.totalorder %s25, 2
      %p195 = scmp.ne.s32.totalorder %s190, %s192
      %p196 = scmp.eq.s32.totalorder %s25, 0
      %p197 = por %p195, %p196
      %p198 = scmp.ne.s32.totalorder %s190, %s192
      %p199 = scmp.eq.s32.totalorder %s30, 2
      %p200 = por %p198, %p199
      %p201 = scmp.ne.s32.totalorder %s192, %s193
      %p202 = scmp.eq.s32.totalorder %s30, 0
      %p203 = por %p201, %p202
      %p204 = scmp.ne.s32.totalorder %s192, %s193
      %p205 = scmp.eq.s32.totalorder %s31, 2
      %p206 = por %p204, %p205
      %p208 = scmp.ne.s32.totalorder %s193, %s207
      %p209 = scmp.eq.s32.totalorder %s31, 0
      %p210 = por %p208, %p209
      %s212 = sadd.s32 %s211, 1
      %p215 = scmp.eq.s32.totalorder %s25, 2
      %p216 = scmp.ne.s32.totalorder %s211, %s213
      %p217 = scmp.eq.s32.totalorder %s25, 0
      %p218 = por %p216, %p217
      %p219 = scmp.ne.s32.totalorder %s211, %s213
      %p220 = scmp.eq.s32.totalorder %s30, 2
      %p221 = por %p219, %p220
      %p222 = scmp.ne.s32.totalorder %s213, %s214
      %p223 = scmp.eq.s32.totalorder %s30, 0
      %p224 = por %p222, %p223
      %p225 = scmp.ne.s32.totalorder %s213, %s214
      %p226 = scmp.eq.s32.totalorder %s31, 2
      %p227 = por %p225, %p226
      %p229 = scmp.ne.s32.totalorder %s214, %s228
      %p230 = scmp.eq.s32.totalorder %s31, 0
      %p231 = por %p229, %p230
      %s233 = sadd.s32 %s232, 1
      %p236 = scmp.eq.s32.totalorder %s25, 2
      %p237 = scmp.ne.s32.totalorder %s232, %s234
      %p238 = scmp.eq.s32.totalorder %s25, 0
      %p239 = por %p237, %p238
      %p240 = scmp.ne.s32.totalorder %s232, %s234
      %p241 = scmp.eq.s32.totalorder %s30, 2
      %p242 = por %p240, %p241
      %p243 = scmp.ne.s32.totalorder %s234, %s235
      %p244 = scmp.eq.s32.totalorder %s30, 0
      %p245 = por %p243, %p244
      %p246 = scmp.ne.s32.totalorder %s234, %s235
      %p247 = scmp.eq.s32.totalorder %s31, 2
      %p248 = por %p246, %p247
      %p250 = scmp.ne.s32.totalorder %s235, %s249
      %p251 = scmp.eq.s32.totalorder %s31, 0
      %p252 = por %p250, %p251
      %s254 = sadd.s32 %s253, 1
      %p257 = scmp.eq.s32.totalorder %s25, 2
      %p258 = scmp.ne.s32.totalorder %s253, %s255
      %p259 = scmp.eq.s32.totalorder %s25, 0
      %p260 = por %p258, %p259
      %p261 = scmp.ne.s32.totalorder %s253, %s255
      %p262 = scmp.eq.s32.totalorder %s30, 2
      %p263 = por %p261, %p262
      %p264 = scmp.ne.s32.totalorder %s255, %s256
      %p265 = scmp.eq.s32.totalorder %s30, 0
      %p266 = por %p264, %p265
      %p267 = scmp.ne.s32.totalorder %s255, %s256
      %p268 = scmp.eq.s32.totalorder %s31, 2
      %p269 = por %p267, %p268
      %p271 = scmp.ne.s32.totalorder %s256, %s270
      %p272 = scmp.eq.s32.totalorder %s31, 0
      %p273 = por %p271, %p272
      %s275 = sadd.s32 %s274, 1
      %p278 = scmp.eq.s32.totalorder %s25, 2
      %p279 = scmp.ne.s32.totalorder %s274, %s276
      %p280 = scmp.eq.s32.totalorder %s25, 0
      %p281 = por %p279, %p280
      %p282 = scmp.ne.s32.totalorder %s274, %s276
      %p283 = scmp.eq.s32.totalorder %s30, 2
      %p284 = por %p282, %p283
      %p285 = scmp.ne.s32.totalorder %s276, %s277
      %p286 = scmp.eq.s32.totalorder %s30, 0
      %p287 = por %p285, %p286
      %p288 = scmp.ne.s32.totalorder %s276, %s277
      %p289 = scmp.eq.s32.totalorder %s31, 2
      %p290 = por %p288, %p289
      %p292 = scmp.ne.s32.totalorder %s277, %s291
      %p293 = scmp.eq.s32.totalorder %s31, 0
      %p294 = por %p292, %p293
      %s296 = sadd.s32 %s295, 1
      %p299 = scmp.eq.s32.totalorder %s25, 2
      %p300 = scmp.ne.s32.totalorder %s295, %s297
      %p301 = scmp.eq.s32.totalorder %s25, 0
      %p302 = por %p300, %p301
      %p303 = scmp.ne.s32.totalorder %s295, %s297
      %p304 = scmp.eq.s32.totalorder %s30, 2
      %p305 = por %p303, %p304
      %p306 = scmp.ne.s32.totalorder %s297, %s298
      %p307 = scmp.eq.s32.totalorder %s30, 0
      %p308 = por %p306, %p307
      %p309 = scmp.ne.s32.totalorder %s297, %s298
      %p310 = scmp.eq.s32.totalorder %s31, 2
      %p311 = por %p309, %p310
      %p313 = scmp.ne.s32.totalorder %s298, %s312
      %p314 = scmp.eq.s32.totalorder %s31, 0
      %p315 = por %p313, %p314
      %p316 = scmp.le.s32.totalorder 1, %s25
      %p317 = scmp.lt.s32.totalorder %s25, 4
      %p318 = pnand %p316, %p317
      %p319 = pneg %p318
      // Predicated region
      $region9: #{vnagg_forward.1} parent=5 // pred_check
        _
      $region10: #{vnagg_forward.1} parent=5 // pred_check_branch
        %321 = sbr.rel (%p318) target = $region12
      $region11: #{vnagg_forward.1} parent=5 // pred_region
        %s322 = ssub.s32 %s25, 1
        // Predicated region
        $region13: #{vnagg_forward.1} parent=11 // pred_check
          %p323 = pneg %p46
        $region14: #{vnagg_forward.1} parent=11 // pred_check_branch
          %325 = sbr.rel (%p323) target = $region16
        $region15: #{vnagg_forward.1} parent=11 // pred_region
          _
        $region16: #{vnagg_forward.1} parent=11 // pred_fallthru
          _
        // Predicated region
        $region17: #{vnagg_forward.1} parent=11 // pred_check
          %p326 = pneg %p119
        $region18: #{vnagg_forward.1} parent=11 // pred_check_branch
          %328 = sbr.rel (%p326) target = $region20
        $region19: #{vnagg_forward.1} parent=11 // pred_region
          %330 = vsyncadd [#allocation8], 0
          %s332 = sshll.u32 %s3, 4
          %s333 = int_to_ptr.hbm [resolvable:$true] %s332
          %s334 = sshll.u32 [#allocation7], 4
          %s335 = int_to_ptr.vmem [resolvable:$true] %s334
          %337 = dma.hbm_to_vmem [thread:$0]  %s333, 64, %s335, [#allocation8]
        $region20: #{vnagg_forward.1} parent=11 // pred_fallthru
          _
        // Predicated region
        $region21: #{vnagg_forward.1} parent=11 // pred_check
          %p338 = pneg %p140
        $region22: #{vnagg_forward.1} parent=11 // pred_check_branch
          %340 = sbr.rel (%p338) target = $region24
        $region23: #{vnagg_forward.1} parent=11 // pred_region
          %342 = vsyncadd [#allocation8], 0
          %s343 = sshll.u32 %s4, 4
          %s344 = int_to_ptr.hbm [resolvable:$true] %s343
          %s345 = sshll.u32 [#allocation9], 4
          %s346 = int_to_ptr.vmem [resolvable:$true] %s345
          %351 = dma.hbm_to_vmem [thread:$0]  %s344, 4096, %s346, [#allocation8], 256, 256, 16
        $region24: #{vnagg_forward.1} parent=11 // pred_fallthru
          _
        // Predicated region
        $region25: #{vnagg_forward.1} parent=11 // pred_check
          %p352 = pneg %p161
        $region26: #{vnagg_forward.1} parent=11 // pred_check_branch
          %354 = sbr.rel (%p352) target = $region28
        $region27: #{vnagg_forward.1} parent=11 // pred_region
          _
        $region28: #{vnagg_forward.1} parent=11 // pred_fallthru
          _
        // Predicated region
        $region29: #{vnagg_forward.1} parent=11 // pred_check
          %p355 = pneg %p182
        $region30: #{vnagg_forward.1} parent=11 // pred_check_branch
          %357 = sbr.rel (%p355) target = $region32
        $region31: #{vnagg_forward.1} parent=11 // pred_region
          _
        $region32: #{vnagg_forward.1} parent=11 // pred_fallthru
          _
        // Predicated region
        $region33: #{vnagg_forward.1} parent=11 // pred_check
          %p358 = pneg %p203
        $region34: #{vnagg_forward.1} parent=11 // pred_check_branch
          %360 = sbr.rel (%p358) target = $region36
        $region35: #{vnagg_forward.1} parent=11 // pred_region
          _
        $region36: #{vnagg_forward.1} parent=11 // pred_fallthru
          _
        // Predicated region
        $region37: #{vnagg_forward.1} parent=11 // pred_check
          %p361 = pneg %p224
        $region38: #{vnagg_forward.1} parent=11 // pred_check_branch
          %363 = sbr.rel (%p361) target = $region40
        $region39: #{vnagg_forward.1} parent=11 // pred_region
          %365 = vsyncadd [#allocation11], 0
          %s366 = sshll.u32 %s8, 4
          %s367 = int_to_ptr.hbm [resolvable:$true] %s366
          %s368 = sshll.u32 [#allocation10], 4
          %s369 = int_to_ptr.vmem [resolvable:$true] %s368
          %374 = dma.hbm_to_vmem [thread:$0]  %s367, 4096, %s369, [#allocation11], 128, 128, 8
        $region40: #{vnagg_forward.1} parent=11 // pred_fallthru
          _
        // Predicated region
        $region41: #{vnagg_forward.1} parent=11 // pred_check
          %p375 = pneg %p245
        $region42: #{vnagg_forward.1} parent=11 // pred_check_branch
          %377 = sbr.rel (%p375) target = $region44
        $region43: #{vnagg_forward.1} parent=11 // pred_region
          _
        $region44: #{vnagg_forward.1} parent=11 // pred_fallthru
          _
        // Predicated region
        $region45: #{vnagg_forward.1} parent=11 // pred_check
          %p378 = pneg %p266
        $region46: #{vnagg_forward.1} parent=11 // pred_check_branch
          %380 = sbr.rel (%p378) target = $region48
        $region47: #{vnagg_forward.1} parent=11 // pred_region
          _
        $region48: #{vnagg_forward.1} parent=11 // pred_fallthru
          _
        // Predicated region
        $region49: #{vnagg_forward.1} parent=11 // pred_check
          %p381 = pneg %p287
        $region50: #{vnagg_forward.1} parent=11 // pred_check_branch
          %383 = sbr.rel (%p381) target = $region52
        $region51: #{vnagg_forward.1} parent=11 // pred_region
          _
        $region52: #{vnagg_forward.1} parent=11 // pred_fallthru
          _
      $region12: #{vnagg_forward.1} parent=5 // pred_fallthru
        _
      %p384 = scmp.lt.s32.totalorder %s25, 3
      // Predicated region
      $region53: #{vnagg_forward.1} parent=5 // pred_check
        %p385 = pneg %p384
      $region54: #{vnagg_forward.1} parent=5 // pred_check_branch
        %387 = sbr.rel (%p385) target = $region56
      $region55: #{vnagg_forward.1} parent=5 // pred_region
        // Predicated region
        $region57: #{vnagg_forward.1} parent=55 // pred_check
          %p388 = pneg %p66
        $region58: #{vnagg_forward.1} parent=55 // pred_check_branch
          %390 = sbr.rel (%p388) target = $region60
        $region59: #{vnagg_forward.1} parent=55 // pred_region
          %p391 = scmp.lt.s32.totalorder %s25, 2
          %s392 = scalar_select %p391, %s25, 2
          %s393 = scalar_lea.vmem %s1, %s392
        $region60: #{vnagg_forward.1} parent=55 // pred_fallthru
          _
        // Predicated region
        $region61: #{vnagg_forward.1} parent=55 // pred_check
          %p394 = pneg %p92
        $region62: #{vnagg_forward.1} parent=55 // pred_check_branch
          %396 = sbr.rel (%p394) target = $region64
        $region63: #{vnagg_forward.1} parent=55 // pred_region
          %s397 = sand.u32 %s82, 1
          %s398 = scalar_lea.sflag [#allocation5], %s397
          %s399 = sand.u32 %s82, 1
          %s400 = smul.addr %s399, 128
          %s401 = scalar_lea.vmem [#allocation4], %s400
          %s402 = smul.u32 16, %s25
          %s403 = ssub.s32 38, %s402
          %p404 = scmp.lt.s32.totalorder %s403, 16
          %s405 = scalar_select %p404, %s403, 16
          %s406 = smul.u32 8, %s405
          %s407 = ssub.s32 128, %s406
          %s408 = sshll.u32 %s407, 4
          %409 = vsyncadd %s398, %s408
          %p410 = scmp.ne.s32.totalorder 0, %s406
          %s411 = smul.addr %s402, 8
          %s412 = scalar_lea.hbm %s2, %s411
          %s413 = smul.u32 8, %s405
          %s414 = sshll.u32 %s412, 4
          %s415 = int_to_ptr.hbm [resolvable:$true] %s414
          %s416 = sshll.u32 %s401, 4
          %s417 = int_to_ptr.vmem [resolvable:$true] %s416
          %s418 = sshll.u32 %s413, 4
          %422 = dma.hbm_to_vmem [thread:$0]  (%p410), %s415, %s418, %s417, %s398, 128, 128, 8
        $region64: #{vnagg_forward.1} parent=55 // pred_fallthru
          _
      $region56: #{vnagg_forward.1} parent=5 // pred_fallthru
        _
      %p423 = scmp.le.s32.totalorder 1, %s25
      %p424 = scmp.lt.s32.totalorder %s25, 4
      %p425 = pnand %p423, %p424
      %p426 = pneg %p425
      // Predicated region
      $region65: #{vnagg_forward.1} parent=5 // pred_check
        _
      $region66: #{vnagg_forward.1} parent=5 // pred_check_branch
        %428 = sbr.rel (%p425) target = $region68
      $region67: #{vnagg_forward.1} parent=5 // pred_region
        %s429 = ssub.s32 %s25, 1
        %s430 = sand.u32 %s85, 1
        %s431 = scalar_lea.sflag [#allocation5], %s430
        %s432 = sand.u32 %s85, 1
        %s433 = smul.addr %s432, 128
        %s434 = scalar_lea.vmem [#allocation4], %s433
        // Predicated region
        $region69: #{vnagg_forward.1} parent=67 // pred_check
          %p435 = pneg %p98
        $region70: #{vnagg_forward.1} parent=67 // pred_check_branch
          %437 = sbr.rel (%p435) target = $region72
        $region71: #{vnagg_forward.1} parent=67 // pred_region
          %439 = dma.done %s431, 2048
        $region72: #{vnagg_forward.1} parent=67 // pred_fallthru
          _
        // Predicated region
        $region73: #{vnagg_forward.1} parent=67 // pred_check
          %p440 = pneg %p119
        $region74: #{vnagg_forward.1} parent=67 // pred_check_branch
          %442 = sbr.rel (%p440) target = $region76
        $region75: #{vnagg_forward.1} parent=67 // pred_region
          %444 = dma.done [#allocation8], 64
        $region76: #{vnagg_forward.1} parent=67 // pred_fallthru
          _
        // Predicated region
        $region77: #{vnagg_forward.1} parent=67 // pred_check
          %p445 = pneg %p140
        $region78: #{vnagg_forward.1} parent=67 // pred_check_branch
          %447 = sbr.rel (%p445) target = $region80
        $region79: #{vnagg_forward.1} parent=67 // pred_region
          %449 = dma.done [#allocation8], 4096
        $region80: #{vnagg_forward.1} parent=67 // pred_fallthru
          _
        // Predicated region
        $region81: #{vnagg_forward.1} parent=67 // pred_check
          %p450 = pneg %p224
        $region82: #{vnagg_forward.1} parent=67 // pred_check_branch
          %452 = sbr.rel (%p450) target = $region84
        $region83: #{vnagg_forward.1} parent=67 // pred_region
          %454 = dma.done [#allocation11], 4096
        $region84: #{vnagg_forward.1} parent=67 // pred_fallthru
          _
        %p455 = pneg %p46
        %p456 = pneg %p43
        %p457 = scmp.lt.s32.totalorder %s30, 2
        %s458 = scalar_select %p457, %s30, 2
        %s459 = scalar_lea.vmem %s1, %s458
        %p460 = pneg %p72
        %p461 = pneg %p69
        %s462 = sand.u32 %s85, 1
        %s463 = scalar_lea.sflag [#allocation5], %s462
        %s464 = sand.u32 %s85, 1
        %s465 = smul.addr %s464, 128
        %s466 = scalar_lea.vmem [#allocation4], %s465
        %p467 = pneg %p98
        %p468 = pneg %p95
        %p469 = pneg %p119
        %p470 = pneg %p116
        %p471 = pneg %p140
        %p472 = pneg %p137
        %p473 = pneg %p161
        %p474 = pneg %p158
        %p475 = pneg %p182
        %p476 = pneg %p179
        %p477 = pneg %p203
        %p478 = pneg %p200
        %p479 = pneg %p224
        %p480 = pneg %p221
        %p481 = pneg %p245
        %p482 = pneg %p242
        %p483 = pneg %p266
        %p484 = pneg %p263
        %p485 = pneg %p287
        %p486 = pneg %p284
        %p487 = pneg %p308
        %p488 = pneg %p305
        %p489 = scmp.lt.s32.totalorder %s30, 2
        %s490 = scalar_select %p489, %s30, 2
        %s491 = scalar_lea.vmem %s1, %s490
        %s492 = smul.u32 16, %s30
        %s493 = ssub.s32 38, %s492
        %p494 = scmp.lt.s32.totalorder %s493, 16
        %s495 = scalar_select %p494, %s493, 16
        %s496 = smul.u32 8, %s495
        %p497 = scmp.eq.s32.totalorder %s30, 0
        // Predicated region
        $region85: #{vnagg_forward.1} parent=67 // pred_check
          %p498 = pneg %p497
        $region86: #{vnagg_forward.1} parent=67 // pred_check_branch
          %500 = sbr.rel (%p498) target = $region88
        $region87: #{vnagg_forward.1} parent=67 // pred_region
          %501 = vst [vmem:[#allocation2] sm:$0xf] 0.0
        $region88: #{vnagg_forward.1} parent=67 // pred_fallthru
          _
        %v502 = vld [vmem:[%s434] sm:$0xff]
        %v503 = vld [vmem:[%s434 + $0x8] sm:$0xff]
        %v504 = vld [vmem:[%s434 + $0x10] sm:$0xff]
        %v505 = vld [vmem:[%s434 + $0x18] sm:$0xff]
        %v506 = vld [vmem:[%s434 + $0x20] sm:$0xff]
        %v507 = vld [vmem:[%s434 + $0x28] sm:$0xff]
        %v508 = vld [vmem:[%s434 + $0x30] sm:$0xff]
        %v509 = vld [vmem:[%s434 + $0x38] sm:$0xff]
        %v510 = vld [vmem:[%s434 + $0x40] sm:$0xff]
        %v511 = vld [vmem:[%s434 + $0x48] sm:$0xff]
        %v512 = vld [vmem:[%s434 + $0x50] sm:$0xff]
        %v513 = vld [vmem:[%s434 + $0x58] sm:$0xff]
        %v514 = vld [vmem:[%s434 + $0x60] sm:$0xff]
        %v515 = vld [vmem:[%s434 + $0x68] sm:$0xff]
        %v516 = vld [vmem:[%s434 + $0x70] sm:$0xff]
        %v517 = vld [vmem:[%s434 + $0x78] sm:$0xff]
        %v518 = vlaneseq
        %v519 = vshrl.u32 %v518, 7
        %v520 = vadd.s32 %v519, 8
        %v521 = vadd.s32 %v519, 16
        %v522 = vadd.s32 %v519, 24
        %v523 = vadd.s32 %v519, 32
        %v524 = vadd.s32 %v519, 40
        %v525 = vadd.s32 %v519, 48
        %v526 = vadd.s32 %v519, 56
        %v527 = vadd.s32 %v519, 64
        %v528 = vadd.s32 %v519, 72
        %v529 = vadd.s32 %v519, 80
        %v530 = vadd.s32 %v519, 88
        %v531 = vadd.s32 %v519, 96
        %v532 = vadd.s32 %v519, 104
        %v533 = vadd.s32 %v519, 112
        %v534 = vadd.s32 %v519, 120
        %s535 = smul.u32 %s30, 128
        %v536 = vstv %s535
        %v537 = vadd.s32 %v519, %v536
        %v538 = vadd.s32 %v520, %v536
        %v539 = vadd.s32 %v521, %v536
        %v540 = vadd.s32 %v522, %v536
        %v541 = vadd.s32 %v523, %v536
        %v542 = vadd.s32 %v524, %v536
        %v543 = vadd.s32 %v525, %v536
        %v544 = vadd.s32 %v526, %v536
        %v545 = vadd.s32 %v527, %v536
        %v546 = vadd.s32 %v528, %v536
        %v547 = vadd.s32 %v529, %v536
        %v548 = vadd.s32 %v530, %v536
        %v549 = vadd.s32 %v531, %v536
        %v550 = vadd.s32 %v532, %v536
        %v551 = vadd.s32 %v533, %v536
        %v552 = vadd.s32 %v534, %v536
        %vm553 = vcmp.lt.s32.totalorder %v537, 300
        %vm554 = vcmp.lt.s32.totalorder %v538, 300
        %vm555 = vcmp.lt.s32.totalorder %v539, 300
        %vm556 = vcmp.lt.s32.totalorder %v540, 300
        %vm557 = vcmp.lt.s32.totalorder %v541, 300
        %vm558 = vcmp.lt.s32.totalorder %v542, 300
        %vm559 = vcmp.lt.s32.totalorder %v543, 300
        %vm560 = vcmp.lt.s32.totalorder %v544, 300
        %vm561 = vcmp.lt.s32.totalorder %v545, 300
        %vm562 = vcmp.lt.s32.totalorder %v546, 300
        %vm563 = vcmp.lt.s32.totalorder %v547, 300
        %vm564 = vcmp.lt.s32.totalorder %v548, 300
        %vm565 = vcmp.lt.s32.totalorder %v549, 300
        %vm566 = vcmp.lt.s32.totalorder %v550, 300
        %vm567 = vcmp.lt.s32.totalorder %v551, 300
        %vm568 = vcmp.lt.s32.totalorder %v552, 300
        %v569 = vsel %vm553, %v502, 0.0
        %v570 = vsel %vm554, %v503, 0.0
        %v571 = vsel %vm555, %v504, 0.0
        %v572 = vsel %vm556, %v505, 0.0
        %v573 = vsel %vm557, %v506, 0.0
        %v574 = vsel %vm558, %v507, 0.0
        %v575 = vsel %vm559, %v508, 0.0
        %v576 = vsel %vm560, %v509, 0.0
        %v577 = vsel %vm561, %v510, 0.0
        %v578 = vsel %vm562, %v511, 0.0
        %v579 = vsel %vm563, %v512, 0.0
        %v580 = vsel %vm564, %v513, 0.0
        %v581 = vsel %vm565, %v514, 0.0
        %v582 = vsel %vm566, %v515, 0.0
        %v583 = vsel %vm567, %v516, 0.0
        %v584 = vsel %vm568, %v517, 0.0
        %v585 = vld [vmem:[%s491] sm:$0x1]
        %v586 = vperm.slane %v585, 0
        %vm587 = vcmp.eq.s32.totalorder %v586, %v519
        %v588 = vsel %vm587, 1, 0
        %v589 = vcvt.s32.f32 %v588
        %v590 = vld [vmem:[#allocation2] sm:$0xf]
        %591 = vmatpush.msra.mxu0 %v584
        %592 = vmatpush.msra.mxu0 %v583
        %593 = vmatpush.msra.mxu0 %v582
        %594 = vmatpush.msra.mxu0 %v581
        %595 = vmatpush.msra.mxu0 %v580
        %596 = vmatpush.msra.mxu0 %v579
        %597 = vmatpush.msra.mxu0 %v578
        %598 = vmatpush.msra.mxu0 %v577
        %599 = vmatpush.msra.mxu0 %v576
        %600 = vmatpush.msra.mxu0 %v575
        %601 = vmatpush.msra.mxu0 %v574
        %602 = vmatpush.msra.mxu0 %v573
        %603 = vmatpush.msra.mxu0 %v572
        %604 = vmatpush.msra.mxu0 %v571
        %605 = vmatpush.msra.mxu0 %v570
        %606 = vmatpush.msra.mxu0 %v569
        %607 = vmatmul.f32.gmra.mxu0 %v589
        %v608 = vpop.f32.mrf.mxu0
        %v609 = vadd.f32 0.0, %v608
        %610 = vdwg.mxu0
        %v611 = vadd.f32 %v590, %v609
        %612 = vst [vmem:[#allocation2] sm:$0xf] %v611
        %p613 = scmp.eq.s32.totalorder %s30, 2
        // Predicated region
        $region89: #{vnagg_forward.1} parent=67 // pred_check
          %p614 = pneg %p613
        $region90: #{vnagg_forward.1} parent=67 // pred_check_branch
          %616 = sbr.rel (%p614) target = $region92
        $region91: #{vnagg_forward.1} parent=67 // pred_region
          %s617 = sld [smem:[#allocation3]]
          %s618 = sadd.f32 %s617, 1.0
          %v619 = vld [vmem:[#allocation7] sm:$0xf]
          %v620 = vstv %s618
          %v621 = vmul.f32 %v620, %v619
          %v622 = vld [vmem:[#allocation2] sm:$0xf]
          %v623 = vadd.f32 %v621, %v622
          %v624 = vld [vmem:[#allocation9] sm:$0xff]
          %v625 = vld [vmem:[#allocation9 + $0x8] sm:$0xff]
          %v626 = vld [vmem:[#allocation9 + $0x10] sm:$0xff]
          %v627 = vld [vmem:[#allocation9 + $0x18] sm:$0xff]
          %v628 = vld [vmem:[#allocation9 + $0x20] sm:$0xff]
          %v629 = vld [vmem:[#allocation9 + $0x28] sm:$0xff]
          %v630 = vld [vmem:[#allocation9 + $0x30] sm:$0xff]
          %v631 = vld [vmem:[#allocation9 + $0x38] sm:$0xff]
          %v632 = vld [vmem:[#allocation9 + $0x40] sm:$0xff]
          %v633 = vld [vmem:[#allocation9 + $0x48] sm:$0xff]
          %v634 = vld [vmem:[#allocation9 + $0x50] sm:$0xff]
          %v635 = vld [vmem:[#allocation9 + $0x58] sm:$0xff]
          %v636 = vld [vmem:[#allocation9 + $0x60] sm:$0xff]
          %v637 = vld [vmem:[#allocation9 + $0x68] sm:$0xff]
          %v638 = vld [vmem:[#allocation9 + $0x70] sm:$0xff]
          %v639 = vld [vmem:[#allocation9 + $0x78] sm:$0xff]
          %v640 = vld [vmem:[#allocation9 + $0x80] sm:$0xff]
          %v641 = vld [vmem:[#allocation9 + $0x88] sm:$0xff]
          %v642 = vld [vmem:[#allocation9 + $0x90] sm:$0xff]
          %v643 = vld [vmem:[#allocation9 + $0x98] sm:$0xff]
          %v644 = vld [vmem:[#allocation9 + $0xa0] sm:$0xff]
          %v645 = vld [vmem:[#allocation9 + $0xa8] sm:$0xff]
          %v646 = vld [vmem:[#allocation9 + $0xb0] sm:$0xff]
          %v647 = vld [vmem:[#allocation9 + $0xb8] sm:$0xff]
          %v648 = vld [vmem:[#allocation9 + $0xc0] sm:$0xff]
          %v649 = vld [vmem:[#allocation9 + $0xc8] sm:$0xff]
          %v650 = vld [vmem:[#allocation9 + $0xd0] sm:$0xff]
          %v651 = vld [vmem:[#allocation9 + $0xd8] sm:$0xff]
          %v652 = vld [vmem:[#allocation9 + $0xe0] sm:$0xff]
          %v653 = vld [vmem:[#allocation9 + $0xe8] sm:$0xff]
          %v654 = vld [vmem:[#allocation9 + $0xf0] sm:$0xff]
          %v655 = vld [vmem:[#allocation9 + $0xf8] sm:$0xff]
          %v656 = vld [vmem:[%s5] sm:$0x3]
          %v658 = vperm.slane %v656, 0
          %v659 = vperm.slane %v656, 1
          %662 = vmatpush.msra.mxu0 %v654
          %663 = vmatpush.msra.mxu0 %v652
          %664 = vmatpush.msra.mxu0 %v650
          %665 = vmatpush.msra.mxu0 %v648
          %666 = vmatpush.msra.mxu0 %v646
          %667 = vmatpush.msra.mxu0 %v644
          %668 = vmatpush.msra.mxu0 %v642
          %669 = vmatpush.msra.mxu0 %v640
          %670 = vmatpush.msra.mxu0 %v638
          %671 = vmatpush.msra.mxu0 %v636
          %672 = vmatpush.msra.mxu0 %v634
          %673 = vmatpush.msra.mxu0 %v632
          %674 = vmatpush.msra.mxu0 %v630
          %675 = vmatpush.msra.mxu0 %v628
          %676 = vmatpush.msra.mxu0 %v626
          %677 = vmatpush.msra.mxu0 %v624
          %678 = vmatmul.f32.gmra.mxu0 %v623
          %v679 = vpop.f32.mrf.mxu0
          %v680 = vadd.f32 %v658, %v679
          %681 = vdwg.mxu0
          %682 = vmatpush.msra.mxu0 %v655
          %683 = vmatpush.msra.mxu0 %v653
          %684 = vmatpush.msra.mxu0 %v651
          %685 = vmatpush.msra.mxu0 %v649
          %686 = vmatpush.msra.mxu0 %v647
          %687 = vmatpush.msra.mxu0 %v645
          %688 = vmatpush.msra.mxu0 %v643
          %689 = vmatpush.msra.mxu0 %v641
          %690 = vmatpush.msra.mxu0 %v639
          %691 = vmatpush.msra.mxu0 %v637
          %692 = vmatpush.msra.mxu0 %v635
          %693 = vmatpush.msra.mxu0 %v633
          %694 = vmatpush.msra.mxu0 %v631
          %695 = vmatpush.msra.mxu0 %v629
          %696 = vmatpush.msra.mxu0 %v627
          %697 = vmatpush.msra.mxu0 %v625
          %698 = vmatmul.f32.gmra.mxu0 %v623
          %v699 = vpop.f32.mrf.mxu0
          %v700 = vadd.f32 %v659, %v699
          %701 = vdwg.mxu0
          %vm702 = vcmask 1043456
          %v703 = vsel %vm702, %v680, 0.0
          %v704 = vrot.slane %v703, 4
          %v705 = vadd.f32 %v703, %v704
          %v706 = vrot.slane %v705, 2
          %v707 = vadd.f32 %v705, %v706
          %v708 = vrot.slane %v707, 1
          %v709 = vadd.f32 %v707, %v708
          %v710 = vsel %vm702, %v700, 0.0
          %v711 = vrot.slane %v710, 4
          %v712 = vadd.f32 %v710, %v711
          %v713 = vrot.slane %v712, 2
          %v714 = vadd.f32 %v712, %v713
          %v715 = vrot.slane %v714, 1
          %v716 = vadd.f32 %v714, %v715
          %v717 = vrcp.pop 4.0
          %v718 = vmul.f32 4.0, %v717
          %v719 = vsub.f32 1.0, %v718
          %v720 = vmul.f32 %v717, %v719
          %v721 = vadd.f32 %v717, %v720
          %vm722 = vweird.f32 %v717
          %v723 = vsel %vm722, %v717, %v721
          %v724 = vmul.f32 %v709, %v723
          %v725 = vmul.f32 %v716, %v723
          %v726 = vsub.f32 %v680, %v724
          %v727 = vsub.f32 %v700, %v725
          %v728 = vmul.f32 %v726, %v726
          %v729 = vmul.f32 %v727, %v727
          %v730 = vsel %vm702, %v728, 0.0
          %v731 = vrot.slane %v730, 4
          %v732 = vadd.f32 %v730, %v731
          %v733 = vrot.slane %v732, 2
          %v734 = vadd.f32 %v732, %v733
          %v735 = vrot.slane %v734, 1
          %v736 = vadd.f32 %v734, %v735
          %v737 = vsel %vm702, %v729, 0.0
          %v738 = vrot.slane %v737, 4
          %v739 = vadd.f32 %v737, %v738
          %v740 = vrot.slane %v739, 2
          %v741 = vadd.f32 %v739, %v740
          %v742 = vrot.slane %v741, 1
          %v743 = vadd.f32 %v741, %v742
          %v744 = vmul.f32 %v736, %v723
          %v745 = vmul.f32 %v743, %v723
          %v746 = vadd.f32 %v744, 1e-05
          %v747 = vadd.f32 %v745, 1e-05
          %v748 = vrsqrt.pop %v746
          %v749 = vmul.f32 %v748, %v746
          %v750 = vmul.f32 %v749, %v748
          %v751 = vmul.f32 0.5, %v750
          %v752 = vsub.f32 1.5, %v751
          %v753 = vmul.f32 %v748, %v752
          %vm754 = vweird.f32 %v746
          %vm755 = vweird.f32 %v748
          %vm756 = vmor %vm754, %vm755
          %v757 = vsel %vm756, %v748, %v753
          %v758 = vrsqrt.pop %v747
          %v759 = vmul.f32 %v758, %v747
          %v760 = vmul.f32 %v759, %v758
          %v761 = vmul.f32 0.5, %v760
          %v762 = vsub.f32 1.5, %v761
          %v763 = vmul.f32 %v758, %v762
          %vm764 = vweird.f32 %v747
          %vm765 = vweird.f32 %v758
          %vm766 = vmor %vm764, %vm765
          %v767 = vsel %vm766, %v758, %v763
          %v768 = vmul.f32 %v726, %v757
          %v769 = vmul.f32 %v727, %v767
          %v770 = vld [vmem:[%s6] sm:$0x3]
          %v772 = vperm.slane %v770, 0
          %v773 = vperm.slane %v770, 1
          %v776 = vmul.f32 %v768, %v772
          %v777 = vmul.f32 %v769, %v773
          %v778 = vld [vmem:[%s7] sm:$0x3]
          %v780 = vperm.slane %v778, 0
          %v781 = vperm.slane %v778, 1
          %v784 = vadd.f32 %v776, %v780
          %v785 = vadd.f32 %v777, %v781
          %v786 = vmax.f32 %v784, 0.0
          %v787 = vmax.f32 %v785, 0.0
          %v788 = vld [vmem:[#allocation10] sm:$0xff]
          %v789 = vld [vmem:[#allocation10 + $0x8] sm:$0xff]
          %v790 = vld [vmem:[#allocation10 + $0x10] sm:$0xff]
          %v791 = vld [vmem:[#allocation10 + $0x18] sm:$0xff]
          %v792 = vld [vmem:[#allocation10 + $0x20] sm:$0xff]
          %v793 = vld [vmem:[#allocation10 + $0x28] sm:$0xff]
          %v794 = vld [vmem:[#allocation10 + $0x30] sm:$0xff]
          %v795 = vld [vmem:[#allocation10 + $0x38] sm:$0xff]
          %v796 = vld [vmem:[#allocation10 + $0x40] sm:$0xff]
          %v797 = vld [vmem:[#allocation10 + $0x48] sm:$0xff]
          %v798 = vld [vmem:[#allocation10 + $0x50] sm:$0xff]
          %v799 = vld [vmem:[#allocation10 + $0x58] sm:$0xff]
          %v800 = vld [vmem:[#allocation10 + $0x60] sm:$0xff]
          %v801 = vld [vmem:[#allocation10 + $0x68] sm:$0xff]
          %v802 = vld [vmem:[#allocation10 + $0x70] sm:$0xff]
          %v803 = vld [vmem:[#allocation10 + $0x78] sm:$0xff]
          %v804 = vld [vmem:[#allocation10 + $0x80] sm:$0xff]
          %v805 = vld [vmem:[#allocation10 + $0x88] sm:$0xff]
          %v806 = vld [vmem:[#allocation10 + $0x90] sm:$0xff]
          %v807 = vld [vmem:[#allocation10 + $0x98] sm:$0xff]
          %v808 = vld [vmem:[#allocation10 + $0xa0] sm:$0xff]
          %v809 = vld [vmem:[#allocation10 + $0xa8] sm:$0xff]
          %v810 = vld [vmem:[#allocation10 + $0xb0] sm:$0xff]
          %v811 = vld [vmem:[#allocation10 + $0xb8] sm:$0xff]
          %v812 = vld [vmem:[#allocation10 + $0xc0] sm:$0xff]
          %v813 = vld [vmem:[#allocation10 + $0xc8] sm:$0xff]
          %v814 = vld [vmem:[#allocation10 + $0xd0] sm:$0xff]
          %v815 = vld [vmem:[#allocation10 + $0xd8] sm:$0xff]
          %v816 = vld [vmem:[#allocation10 + $0xe0] sm:$0xff]
          %v817 = vld [vmem:[#allocation10 + $0xe8] sm:$0xff]
          %v818 = vld [vmem:[#allocation10 + $0xf0] sm:$0xff]
          %v819 = vld [vmem:[#allocation10 + $0xf8] sm:$0xff]
          %v820 = vld [vmem:[%s9] sm:$0x1]
          %v822 = vperm.slane %v820, 0
          %824 = vmatpush.msra.mxu0 %v803
          %825 = vmatpush.msra.mxu0 %v802
          %826 = vmatpush.msra.mxu0 %v801
          %827 = vmatpush.msra.mxu0 %v800
          %828 = vmatpush.msra.mxu0 %v799
          %829 = vmatpush.msra.mxu0 %v798
          %830 = vmatpush.msra.mxu0 %v797
          %831 = vmatpush.msra.mxu0 %v796
          %832 = vmatpush.msra.mxu0 %v795
          %833 = vmatpush.msra.mxu0 %v794
          %834 = vmatpush.msra.mxu0 %v793
          %835 = vmatpush.msra.mxu0 %v792
          %836 = vmatpush.msra.mxu0 %v791
          %837 = vmatpush.msra.mxu0 %v790
          %838 = vmatpush.msra.mxu0 %v789
          %839 = vmatpush.msra.mxu0 %v788
          %840 = vmatmul.f32.gmra.mxu0 %v786
          %v841 = vpop.f32.mrf.mxu0
          %v842 = vadd.f32 %v822, %v841
          %843 = vdwg.mxu0
          %844 = vmatpush.msra.mxu0 %v819
          %845 = vmatpush.msra.mxu0 %v818
          %846 = vmatpush.msra.mxu0 %v817
          %847 = vmatpush.msra.mxu0 %v816
          %848 = vmatpush.msra.mxu0 %v815
          %849 = vmatpush.msra.mxu0 %v814
          %850 = vmatpush.msra.mxu0 %v813
          %851 = vmatpush.msra.mxu0 %v812
          %852 = vmatpush.msra.mxu0 %v811
          %853 = vmatpush.msra.mxu0 %v810
          %854 = vmatpush.msra.mxu0 %v809
          %855 = vmatpush.msra.mxu0 %v808
          %856 = vmatpush.msra.mxu0 %v807
          %857 = vmatpush.msra.mxu0 %v806
          %858 = vmatpush.msra.mxu0 %v805
          %859 = vmatpush.msra.mxu0 %v804
          %860 = vmatmul.f32.gmra.mxu0 %v787
          %v861 = vpop.f32.mrf.mxu0
          %v862 = vadd.f32 %v842, %v861
          %863 = vdwg.mxu0
          %v864 = vsel %vm702, %v862, 0.0
          %v865 = vrot.slane %v864, 4
          %v866 = vadd.f32 %v864, %v865
          %v867 = vrot.slane %v866, 2
          %v868 = vadd.f32 %v866, %v867
          %v869 = vrot.slane %v868, 1
          %v870 = vadd.f32 %v868, %v869
          %v871 = vmul.f32 %v870, %v723
          %v872 = vsub.f32 %v862, %v871
          %v873 = vmul.f32 %v872, %v872
          %v874 = vsel %vm702, %v873, 0.0
          %v875 = vrot.slane %v874, 4
          %v876 = vadd.f32 %v874, %v875
          %v877 = vrot.slane %v876, 2
          %v878 = vadd.f32 %v876, %v877
          %v879 = vrot.slane %v878, 1
          %v880 = vadd.f32 %v878, %v879
          %v881 = vmul.f32 %v880, %v723
          %v882 = vadd.f32 %v881, 1e-05
          %v883 = vrsqrt.pop %v882
          %v884 = vmul.f32 %v883, %v882
          %v885 = vmul.f32 %v884, %v883
          %v886 = vmul.f32 0.5, %v885
          %v887 = vsub.f32 1.5, %v886
          %v888 = vmul.f32 %v883, %v887
          %vm889 = vweird.f32 %v882
          %vm890 = vweird.f32 %v883
          %vm891 = vmor %vm889, %vm890
          %v892 = vsel %vm891, %v883, %v888
          %v893 = vmul.f32 %v872, %v892
          %v894 = vld [vmem:[%s10] sm:$0x1]
          %v896 = vperm.slane %v894, 0
          %v898 = vmul.f32 %v893, %v896
          %v899 = vld [vmem:[%s11] sm:$0x1]
          %v901 = vperm.slane %v899, 0
          %v903 = vadd.f32 %v898, %v901
          %v904 = vmax.f32 %v903, 0.0
          %905 = vst [vmem:[#allocation12] sm:$0xf] %v904
        $region92: #{vnagg_forward.1} parent=67 // pred_fallthru
          _
        // Predicated region
        $region93: #{vnagg_forward.1} parent=67 // pred_check
          %p906 = pneg %p305
        $region94: #{vnagg_forward.1} parent=67 // pred_check_branch
          %908 = sbr.rel (%p906) target = $region96
        $region95: #{vnagg_forward.1} parent=67 // pred_region
          %910 = vsyncadd [#allocation6], 0
          %s912 = sshll.u32 [#allocation12], 4
          %s913 = int_to_ptr.vmem [resolvable:$true] %s912
          %s914 = sshll.u32 %s12, 4
          %s915 = int_to_ptr.hbm [resolvable:$true] %s914
          %917 = dma.vmem_to_hbm [thread:$0]  %s913, 64, %s915, [#allocation6]
        $region96: #{vnagg_forward.1} parent=67 // pred_fallthru
          _
        // Predicated region
        $region97: #{vnagg_forward.1} parent=67 // pred_check
          %p918 = pneg %p305
        $region98: #{vnagg_forward.1} parent=67 // pred_check_branch
          %920 = sbr.rel (%p918) target = $region100
        $region99: #{vnagg_forward.1} parent=67 // pred_region
          %922 = dma.done [#allocation6], 64
        $region100: #{vnagg_forward.1} parent=67 // pred_fallthru
          _
      $region68: #{vnagg_forward.1} parent=5 // pred_fallthru
        _
      %p923 = scmp.le.s32.totalorder 2, %s25
      // Predicated region
      $region101: #{vnagg_forward.1} parent=5 // pred_check
        %p924 = pneg %p923
      $region102: #{vnagg_forward.1} parent=5 // pred_check_branch
        %926 = sbr.rel (%p924) target = $region104
      $region103: #{vnagg_forward.1} parent=5 // pred_region
        %s927 = ssub.s32 %s25, 2
      $region104: #{vnagg_forward.1} parent=5 // pred_fallthru
        _
    $region6: #{vnagg_forward.1} parent=1 // loop_footer
      %s29 = sadd.s32 1, %s25
    $region7: #{vnagg_forward.1} parent=1 // loop_footer_branch
      %24 = sbr.rel target = $region3
    $region8: #{vnagg_forward.1} parent=1 // loop_exit
      _
    %928 = vsyncpa [#allocation5], 1
    %s929 = scalar_lea.sflag [#allocation5], 1
    %930 = vsyncpa %s929, 1
    %931 = vsyncpa [#allocation8], 1
    %932 = vsyncpa [#allocation11], 1
    %933 = vsyncpa [#allocation6], 1
    %s934 = scalar_lea.sflag [#allocation6], 1
    %935 = vsyncpa %s934, 1

</llo_original>
